<compile_context>
chip_gen: v5e
topology: v5e:2x2
jax: 0.10.0
libtpu: 0.0.40
codegen_flags: <defaults>
</compile_context>

<pallas_src>
import jax
import jax.numpy as jnp
from jax.experimental import pallas as pl
from jax.experimental.pallas import tpu as pltpu

# ----- fixed (non-trainable) feed constants, baked into the kernel -----------
G1, G2, GL = 4.0, 8.0, 2.0
U1, U2, U3, U4 = -1.2, 18.0, 12.0, 17.4
V1, V2, VL = 120.0, -84.0, -60.0
I_EXT = 40.0

# trainable parameter tau_w: nn.Parameter(1.5 * (1/(1/15.0))) -> deterministic init
TAU_W_INIT = 1.5 * (1.0 / (1.0 / 15.0))  # = 22.5

_ROW_LANES = 256        # 128 interleaved (V, w) f32 pairs per row (2 vregs wide)
_MAX_BLOCK_ROWS = 1024  # (1024, 256) f32 tile = 1 MiB; in+out double-buffered = 4 MiB
_SMALL_N = 1024         # below this a fused XLA expression beats pallas_call fixed cost


def _round_up(x, m):
    return -(-x // m) * m


def _odefunc_kernel(inv_tau_ref, x_ref, o_ref):
    """x_ref / o_ref: (block_rows, 256) f32 VMEM blocks holding interleaved
    [V0, w0, V1, w1, ...] pairs.  inv_tau_ref: (1,) f32 in SMEM (= 1/tau_w)."""
    inv_tau_w = inv_tau_ref[0]
    x = x_ref[...]

    # Lane parity: even lanes hold V, odd lanes hold w of the same neuron.
    lane = jax.lax.broadcasted_iota(jnp.int32, x.shape, 1)
    is_v = jnp.bitwise_and(lane, 1) == 0
    lane_f = lane.astype(jnp.float32)
    partner_lane = lane_f + jnp.where(is_v, 1.0, -1.0)   # lane index i^1 (exact ints)

    # Adjacent-lane swap on the (idle) XLU: rotate by +1 and by L-1; the rotated
    # iota says, per lane, which rotation delivered lane i^1 -- this is agnostic
    # to the rotate direction convention and handles the wrap-around lanes.
    n_lanes = x.shape[-1]
    r_a = pltpu.roll(x, 1, axis=1)
    r_b = pltpu.roll(x, n_lanes - 1, axis=1)
    a_src = pltpu.roll(lane_f, 1, axis=1)                # lane-of-origin of r_a
    partner = jnp.where(a_src == partner_lane, r_a, r_b)  # x[..., i^1] at lane i

    v = jnp.where(is_v, x, partner)                      # V_j at lanes 2j and 2j+1
    w = jnp.where(is_v, partner, x)                      # w_j at lanes 2j and 2j+1

    # One exp + one divide serves both sigmoids: m on the V-lanes (even), wst on
    # the w-lanes (odd) -- exactly the expressions of the PyTorch forward.
    sig = 1.0 / (1.0 + jnp.exp(jnp.where(is_v,
                                         2.0 * (U1 - v) / U2,
                                         2.0 * (U3 - v) / U4)))
    # cosh((V-u3)/(2*u4)) via exp(a) and exp(-a): no divide, needed on w-lanes.
    a = (v - U3) / (2.0 * U4)
    cosh_a = 0.5 * (jnp.exp(a) + jnp.exp(-a))

    dv = -G1 * sig * (v - V1) - G2 * w * (v - V2) - GL * (v - VL) + I_EXT
    dw = (sig - w) * cosh_a * inv_tau_w                  # == (wst - w) / tau

    o_ref[...] = jnp.where(is_v, dv, dw)                 # re-interleave [dV, dw, ...]


def _morris_lecar_jnp(v, w, inv_tau_w):
    """Fused-XLA fast path for small N (same math as the kernel)."""
    m = 1.0 / (1.0 + jnp.exp(2.0 * (U1 - v) / U2))
    wst = 1.0 / (1.0 + jnp.exp(2.0 * (U3 - v) / U4))
    cosh_a = jnp.cosh((v - U3) / (2.0 * U4))
    dv = -G1 * m * (v - V1) - G2 * w * (v - V2) - GL * (v - VL) + I_EXT
    dw = (wst - w) * cosh_a * inv_tau_w
    return dv, dw


def ode_func(t, y, tau_w=TAU_W_INIT):
    """Pallas equivalent of ODEFunc.forward(t, y).  y: (N, 2) f32 -> (N, 2) f32."""
    del t  # unused, as in the PyTorch module
    y = jnp.asarray(y, jnp.float32)
    n = y.shape[0]
    inv_tau_w = jnp.float32(1.0) / jnp.asarray(tau_w, jnp.float32)

    if n < _SMALL_N:
        dv, dw = _morris_lecar_jnp(y[:, 0], y[:, 1], inv_tau_w)
        return jnp.stack([dv, dw], axis=1)

    total = 2 * n
    rows = pl.cdiv(total, _ROW_LANES)
    padded_total = rows * _ROW_LANES
    if padded_total == total:
        x2d = y.reshape(rows, _ROW_LANES)        # pure view of the (N, 2) buffer, no copy
    else:
        # Ragged N: pad the flat interleaved view up to a whole 128-pair row.
        x2d = jnp.pad(y.reshape(-1), (0, padded_total - total)).reshape(rows, _ROW_LANES)

    if rows <= 8:
        block_rows = rows                        # one full-extent tile
    else:
        # >= 2 "parallel" tiles (v7x megacore uses both TensorCores), capped at
        # 1 MiB tiles; the cdiv grid lets Pallas mask the ragged last tile
        # instead of padding the array up to a block multiple.
        block_rows = min(_MAX_BLOCK_ROWS, _round_up(pl.cdiv(rows, 2), 8))
    grid = (pl.cdiv(rows, block_rows),)

    spec = pl.BlockSpec((block_rows, _ROW_LANES), lambda i, inv_tau: (i, 0))
    out2d = pl.pallas_call(
        _odefunc_kernel,
        out_shape=jax.ShapeDtypeStruct((rows, _ROW_LANES), jnp.float32),
        grid_spec=pltpu.PrefetchScalarGridSpec(
            num_scalar_prefetch=1,               # 1/tau_w lands in SMEM
            grid=grid,
            in_specs=[spec],
            out_specs=spec,
        ),
        compiler_params=pltpu.CompilerParams(
            dimension_semantics=("parallel",),   # megacore sharding on v7x, no-op elsewhere
        ),
    )(inv_tau_w.reshape(1), x2d)

    if padded_total == total:
        return out2d.reshape(n, 2)               # pure view back to (N, 2)
    return out2d.reshape(-1)[:total].reshape(n, 2)


def _reference(t, y, tau_w=TAU_W_INIT):
    """Pure-JAX mirror of the PyTorch ODEFunc.forward."""
    del t
    x = y.T
    v, w = x[0], x[1]
    m = 1.0 / (1.0 + jnp.exp(2.0 * (U1 - v) / U2))
    wst = 1.0 / (1.0 + jnp.exp(2.0 * (U3 - v) / U4))
    tau = tau_w / jnp.cosh((v - U3) / (2.0 * U4))
    dv = -G1 * m * (v - V1) - G2 * w * (v - V2) - GL * (v - VL) + I_EXT
    dw = (wst - w) / tau
    return jnp.stack([dv, dw], axis=0).T


if __name__ == "__main__":
    key = jax.random.PRNGKey(0)
    t = jnp.float32(0.0)

    # N = 8    -> small-N fused-XLA path
    # N = 1024 -> Pallas, copy-free aligned layout, single tile
    # N = 2048 -> Pallas, copy-free aligned layout, 2 parallel tiles
    # N = 3000 -> Pallas, ragged N (pad to a whole 128-pair row) + ragged last tile
    for N in (8, 1024, 2048, 3000):
        kv, kw = jax.random.split(jax.random.fold_in(key, N))
        v0 = jax.random.uniform(kv, (N,), jnp.float32, minval=-80.0, maxval=40.0)
        w0 = jax.random.uniform(kw, (N,), jnp.float32, minval=0.0, maxval=1.0)
        y = jnp.stack([v0, w0], axis=1)          # (N, 2) as in the module

        out = jax.block_until_ready(ode_func(t, y))
        ref = _reference(t, y)

        if out.shape != (N, 2):
            raise SystemExit(f"shape mismatch at N={N}: {out.shape}")
        # Column-scaled max error (dV spans O(100), dw spans O(0.1)).
        scale = jnp.maximum(jnp.max(jnp.abs(ref), axis=0), 1.0)
        err = float(jnp.max(jnp.abs(out - ref) / scale))
        if not err < 1e-5:
            raise SystemExit(f"numerical mismatch at N={N}: scaled max err = {err:.3e}")

    print("KERNEL_OK")
</pallas_src>

<mosaic_0001>
module attributes {stable_mosaic.version = 11 : i64} {
  func.func @_odefunc_kernel(%arg0: i32, %arg1: memref<1xf32, #tpu.memory_space<smem>>, %arg2: memref<8x256xf32, #tpu.memory_space<vmem>>, %arg3: memref<8x256xf32, #tpu.memory_space<vmem>>) attributes {dimension_semantics = [#tpu.dimension_semantics<parallel>], iteration_bounds = array<i64: 1>, scalar_prefetch = 1 : i64, scratch_operands = 0 : i64, tpu.core_type = #tpu.core_type<tc>, window_params = [{transform_indices = @transform_0, window_bounds = array<i64: 8, 256>}, {transform_indices = @transform_1, window_bounds = array<i64: 8, 256>}]} {
    %c0 = arith.constant 0 : index
    %0 = memref.load %arg1[%c0] : memref<1xf32, #tpu.memory_space<smem>>
    %c0_0 = arith.constant 0 : index
    %c0_1 = arith.constant 0 : index
    %1 = vector.load %arg2[%c0_0, %c0_1] : memref<8x256xf32, #tpu.memory_space<vmem>>, vector<8x256xf32>
    %2 = tpu.iota {dimensions = array<i32: 1>} : vector<8x256xi32>
    %c1_i32 = arith.constant 1 : i32
    %3 = vector.broadcast %c1_i32 : i32 to vector<8x256xi32>
    %4 = arith.andi %2, %3 : vector<8x256xi32>
    %c0_i32 = arith.constant 0 : i32
    %5 = vector.broadcast %c0_i32 : i32 to vector<8x256xi32>
    %6 = arith.cmpi eq, %4, %5 : vector<8x256xi32>
    %7 = arith.sitofp %2 : vector<8x256xi32> to vector<8x256xf32>
    %cst = arith.constant 1.000000e+00 : f32
    %cst_2 = arith.constant -1.000000e+00 : f32
    %8 = vector.broadcast %cst : f32 to vector<8x256xf32>
    %9 = vector.broadcast %cst_2 : f32 to vector<8x256xf32>
    %10 = arith.select %6, %8, %9 : vector<8x256xi1>, vector<8x256xf32>
    %11 = arith.addf %7, %10 : vector<8x256xf32>
    %c1_i32_3 = arith.constant 1 : i32
    %12 = tpu.dynamic_rotate %1 by %c1_i32_3 dim 1 : vector<8x256xf32>, i32 -> vector<8x256xf32>
    %c255_i32 = arith.constant 255 : i32
    %13 = tpu.dynamic_rotate %1 by %c255_i32 dim 1 : vector<8x256xf32>, i32 -> vector<8x256xf32>
    %c1_i32_4 = arith.constant 1 : i32
    %14 = tpu.dynamic_rotate %7 by %c1_i32_4 dim 1 : vector<8x256xf32>, i32 -> vector<8x256xf32>
    %15 = arith.cmpf oeq, %14, %11 : vector<8x256xf32>
    %16 = arith.select %15, %12, %13 : vector<8x256xi1>, vector<8x256xf32>
    %17 = arith.select %6, %1, %16 : vector<8x256xi1>, vector<8x256xf32>
    %18 = arith.select %6, %16, %1 : vector<8x256xi1>, vector<8x256xf32>
    %cst_5 = arith.constant -1.200000e+00 : f32
    %19 = vector.broadcast %cst_5 : f32 to vector<8x256xf32>
    %20 = arith.subf %19, %17 : vector<8x256xf32>
    %cst_6 = arith.constant 2.000000e+00 : f32
    %21 = vector.broadcast %cst_6 : f32 to vector<8x256xf32>
    %22 = arith.mulf %21, %20 : vector<8x256xf32>
    %cst_7 = arith.constant 1.800000e+01 : f32
    %23 = vector.broadcast %cst_7 : f32 to vector<8x256xf32>
    %24 = arith.divf %22, %23 : vector<8x256xf32>
    %cst_8 = arith.constant 1.200000e+01 : f32
    %25 = vector.broadcast %cst_8 : f32 to vector<8x256xf32>
    %26 = arith.subf %25, %17 : vector<8x256xf32>
    %cst_9 = arith.constant 2.000000e+00 : f32
    %27 = vector.broadcast %cst_9 : f32 to vector<8x256xf32>
    %28 = arith.mulf %27, %26 : vector<8x256xf32>
    %cst_10 = arith.constant 1.740000e+01 : f32
    %29 = vector.broadcast %cst_10 : f32 to vector<8x256xf32>
    %30 = arith.divf %28, %29 : vector<8x256xf32>
    %31 = arith.select %6, %24, %30 : vector<8x256xi1>, vector<8x256xf32>
    %32 = math.exp %31 : vector<8x256xf32>
    %cst_11 = arith.constant 1.000000e+00 : f32
    %33 = vector.broadcast %cst_11 : f32 to vector<8x256xf32>
    %34 = arith.addf %33, %32 : vector<8x256xf32>
    %cst_12 = arith.constant 1.000000e+00 : f32
    %35 = vector.broadcast %cst_12 : f32 to vector<8x256xf32>
    %36 = arith.divf %35, %34 : vector<8x256xf32>
    %cst_13 = arith.constant 1.200000e+01 : f32
    %37 = vector.broadcast %cst_13 : f32 to vector<8x256xf32>
    %38 = arith.subf %17, %37 : vector<8x256xf32>
    %cst_14 = arith.constant 3.480000e+01 : f32
    %39 = vector.broadcast %cst_14 : f32 to vector<8x256xf32>
    %40 = arith.divf %38, %39 : vector<8x256xf32>
    %41 = math.exp %40 : vector<8x256xf32>
    %cst_15 = arith.constant 0.000000e+00 : f32
    %42 = vector.broadcast %cst_15 : f32 to vector<8x256xf32>
    %43 = arith.subf %42, %40 : vector<8x256xf32>
    %44 = math.exp %43 : vector<8x256xf32>
    %45 = arith.addf %41, %44 : vector<8x256xf32>
    %cst_16 = arith.constant 5.000000e-01 : f32
    %46 = vector.broadcast %cst_16 : f32 to vector<8x256xf32>
    %47 = arith.mulf %46, %45 : vector<8x256xf32>
    %cst_17 = arith.constant -4.000000e+00 : f32
    %48 = vector.broadcast %cst_17 : f32 to vector<8x256xf32>
    %49 = arith.mulf %48, %36 : vector<8x256xf32>
    %cst_18 = arith.constant 1.200000e+02 : f32
    %50 = vector.broadcast %cst_18 : f32 to vector<8x256xf32>
    %51 = arith.subf %17, %50 : vector<8x256xf32>
    %52 = arith.mulf %49, %51 : vector<8x256xf32>
    %cst_19 = arith.constant 8.000000e+00 : f32
    %53 = vector.broadcast %cst_19 : f32 to vector<8x256xf32>
    %54 = arith.mulf %53, %18 : vector<8x256xf32>
    %cst_20 = arith.constant -8.400000e+01 : f32
    %55 = vector.broadcast %cst_20 : f32 to vector<8x256xf32>
    %56 = arith.subf %17, %55 : vector<8x256xf32>
    %57 = arith.mulf %54, %56 : vector<8x256xf32>
    %58 = arith.subf %52, %57 : vector<8x256xf32>
    %cst_21 = arith.constant -6.000000e+01 : f32
    %59 = vector.broadcast %cst_21 : f32 to vector<8x256xf32>
    %60 = arith.subf %17, %59 : vector<8x256xf32>
    %cst_22 = arith.constant 2.000000e+00 : f32
    %61 = vector.broadcast %cst_22 : f32 to vector<8x256xf32>
    %62 = arith.mulf %61, %60 : vector<8x256xf32>
    %63 = arith.subf %58, %62 : vector<8x256xf32>
    %cst_23 = arith.constant 4.000000e+01 : f32
    %64 = vector.broadcast %cst_23 : f32 to vector<8x256xf32>
    %65 = arith.addf %63, %64 : vector<8x256xf32>
    %66 = arith.subf %36, %18 : vector<8x256xf32>
    %67 = arith.mulf %66, %47 : vector<8x256xf32>
    %68 = vector.broadcast %0 : f32 to vector<8x256xf32>
    %69 = arith.mulf %67, %68 : vector<8x256xf32>
    %70 = arith.select %6, %65, %69 : vector<8x256xi1>, vector<8x256xf32>
    %c0_24 = arith.constant 0 : index
    %c0_25 = arith.constant 0 : index
    %71 = vector.load %arg3[%c0_24, %c0_25] : memref<8x256xf32, #tpu.memory_space<vmem>>, vector<8x256xf32>
    tpu.vector_store %arg3[%c0_24, %c0_25], %70 {strides = array<i32>} : memref<8x256xf32, #tpu.memory_space<vmem>>, vector<8x256xf32>,
    return
  }
  func.func @transform_0(%arg0: i32, %arg1: memref<1xf32, #tpu.memory_space<smem>>) -> (i32, i32) {
    %c0_i32 = arith.constant 0 : i32
    %c0_i32_0 = arith.constant 0 : i32
    return %arg0, %c0_i32 : i32, i32
  }
  func.func @transform_1(%arg0: i32, %arg1: memref<1xf32, #tpu.memory_space<smem>>) -> (i32, i32) {
    %c0_i32 = arith.constant 0 : i32
    %c0_i32_0 = arith.constant 0 : i32
    return %arg0, %c0_i32 : i32, i32
  }
}

</mosaic_0001>

<llo_original>
// kernel: tpu_custom_call.1
$region0: #{tpu_custom_call.1}
  #allocation0 [shape = 'u32[]', space=smem, size = 0x4, offset = 0x4, fixed_abs, tag = 'smem constant byte address 0x4 - core index']
  #allocation1 [shape = 'u32[72,128]{1,0:T(1,128)}', space=vmem, size = 0x9000, scoped, tag = 'internal scratch']
  #allocation2 [shape = 's32[1]{0}', space=sflag, size = 0x4, scoped, tag = 'scoped memory for tpu_custom_call.1']
  #allocation3 [shape = 'f32[1]{0:T(128)S(6)}', space=smem, size = 0x200, scoped, tag = 'prefetched SMEM operand 0']
  %s0 = inlined_call_operand.<no memory space> [shape: f32[1], index: 0, kind: input, shape index: {}]
  %s1 = inlined_call_operand.hbm [shape: f32[8,256], index: 1, kind: input, shape index: {}]
  %s2 = inlined_call_operand.hbm [shape: f32[8,256], index: 2, kind: output, shape index: {}]
  %s3 = sld [smem:[#allocation0]]
  $region18: #{tpu_custom_call.1} parent=0
    _
  %s5 = ssub.s32 1, %s3
  %s6 = scalar_select 0, %s5, %s3
  %7 = sst [smem:[#allocation3]] %s0
  $region1: #{tpu_custom_call.1} parent=0
    #allocation4 [shape = 'u8[8192]{0}', space=vmem, size = 0x2000, scoped, tag = 'input window, operand 1, single buffered']
    #allocation5 [shape = 's32[1]{0}', space=sflag, size = 0x4, scoped, tag = 'scoped memory for tpu_custom_call.1']
    #allocation6 [shape = 's32[1]{0}', space=sflag, size = 0x4, scoped, tag = 'scoped memory for tpu_custom_call.1']
    #allocation7 [shape = 'u8[8192]{0}', space=vmem, size = 0x2000, scoped, tag = 'output window, operand 0, single buffered']
    %8 = vsyncpa [#allocation5], 0
    %9 = vsyncpa [#allocation6], 0
    // Predicated region
    $region2: #{tpu_custom_call.1} parent=1 // pred_check
      _
    $region3: #{tpu_custom_call.1} parent=1 // pred_check_branch
      %11 = sbr.rel (0) target = $region5
    $region4: #{tpu_custom_call.1} parent=1 // pred_region
      %13 = vsyncadd [#allocation5], 0
      %s15 = sshll.u32 %s1, 4
      %s16 = int_to_ptr.hbm [resolvable:$true] %s15
      %s17 = sshll.u32 [#allocation4], 4
      %s18 = int_to_ptr.vmem [resolvable:$true] %s17
      %20 = dma.hbm_to_vmem [thread:$0]  %s16, 256, %s18, [#allocation5]
    $region5: #{tpu_custom_call.1} parent=1 // pred_fallthru
      _
    // Predicated region
    $region6: #{tpu_custom_call.1} parent=1 // pred_check
      _
    $region7: #{tpu_custom_call.1} parent=1 // pred_check_branch
      %22 = sbr.rel (0) target = $region9
    $region8: #{tpu_custom_call.1} parent=1 // pred_region
      %24 = dma.done [#allocation5], 256
    $region9: #{tpu_custom_call.1} parent=1 // pred_fallthru
      _
    %s25 = sld [smem:[#allocation3]]
    %v26 = vld [vmem:[#allocation4] sm:$0xff]
    %v27 = vld [vmem:[#allocation4 + $0x8] sm:$0xff]
    %v28 = vlaneseq
    %v29 = vand.u32 %v28, 127
    %v30 = vadd.s32 %v29, 128
    %v31 = vand.u32 %v29, 1
    %v32 = vand.u32 %v30, 1
    %vm33 = vcmp.eq.s32.totalorder %v31, 0
    %vm34 = vcmp.eq.s32.totalorder %v32, 0
    %v35 = vcvt.s32.f32 %v29
    %v36 = vcvt.s32.f32 %v30
    %v37 = vsel %vm33, 1.0, -1.0
    %v38 = vsel %vm34, 1.0, -1.0
    %v39 = vadd.f32 %v35, %v37
    %v40 = vadd.f32 %v36, %v38
    %41 = vrot.lane.b32.xlu0 %v26, 1
    %v42 = vpop.permute.xlu0 %41
    %43 = vrot.lane.b32.xlu0 %v27, 1
    %v44 = vpop.permute.xlu0 %43
    %vm45 = vcmp.lt.s32.totalorder %v29, 1
    %v46 = vsel %vm45, %v42, %v44
    %v47 = vsel %vm45, %v44, %v42
    %48 = vrot.lane.b32.xlu0 %v26, 127
    %v49 = vpop.permute.xlu0 %48
    %50 = vrot.lane.b32.xlu0 %v27, 127
    %v51 = vpop.permute.xlu0 %50
    %vm52 = vcmp.lt.s32.totalorder %v29, 127
    %v53 = vsel %vm52, %v49, %v51
    %v54 = vsel %vm52, %v51, %v49
    %55 = vrot.lane.b32.xlu0 %v35, 1
    %v56 = vpop.permute.xlu0 %55
    %57 = vrot.lane.b32.xlu0 %v36, 1
    %v58 = vpop.permute.xlu0 %57
    %v59 = vsel %vm45, %v56, %v58
    %v60 = vsel %vm45, %v58, %v56
    %vm61 = vcmp.eq.f32.partialorder %v60, %v39
    %vm62 = vcmp.eq.f32.partialorder %v59, %v40
    %v63 = vsel %vm61, %v47, %v53
    %v64 = vsel %vm62, %v46, %v54
    %v65 = vsel %vm33, %v26, %v63
    %v66 = vsel %vm34, %v27, %v64
    %v67 = vsel %vm33, %v63, %v26
    %v68 = vsel %vm34, %v64, %v27
    %v69 = vsub.f32 -1.2, %v65
    %v70 = vsub.f32 -1.2, %v66
    %v71 = vmul.f32 %v69, 2.0
    %v72 = vmul.f32 %v70, 2.0
    %v73 = vrcp.pop 18.0
    %v74 = vmul.f32 18.0, %v73
    %v75 = vsub.f32 1.0, %v74
    %v76 = vmul.f32 %v73, %v75
    %v77 = vadd.f32 %v73, %v76
    %vm78 = vweird.f32 %v73
    %v79 = vsel %vm78, %v73, %v77
    %v80 = vmul.f32 %v71, %v79
    %v81 = vmul.f32 %v72, %v79
    %v82 = vsub.f32 12.0, %v65
    %v83 = vsub.f32 12.0, %v66
    %v84 = vmul.f32 %v82, 2.0
    %v85 = vmul.f32 %v83, 2.0
    %v86 = vrcp.pop 17.4
    %v87 = vmul.f32 17.4, %v86
    %v88 = vsub.f32 1.0, %v87
    %v89 = vmul.f32 %v86, %v88
    %v90 = vadd.f32 %v86, %v89
    %vm91 = vweird.f32 %v86
    %v92 = vsel %vm91, %v86, %v90
    %v93 = vmul.f32 %v84, %v92
    %v94 = vmul.f32 %v85, %v92
    %v95 = vsel %vm33, %v80, %v93
    %v96 = vsel %vm34, %v81, %v94
    %v97 = vmul.f32 %v95, 1.442695
    %v98 = vpow.pop %v97
    %v99 = vmul.f32 %v96, 1.442695
    %v100 = vpow.pop %v99
    %v101 = vadd.f32 %v98, 1.0
    %v102 = vadd.f32 %v100, 1.0
    %v103 = vrcp.pop %v101
    %v104 = vmul.f32 %v101, %v103
    %v105 = vsub.f32 1.0, %v104
    %v106 = vmul.f32 %v103, %v105
    %v107 = vadd.f32 %v103, %v106
    %vm108 = vweird.f32 %v101
    %vm109 = vweird.f32 %v103
    %vm110 = vmor %vm108, %vm109
    %v111 = vsel %vm110, %v103, %v107
    %v112 = vand.u32 2147483647, %v101
    %vm113 = vcmp.eq.f32.partialorder %v112, 8.507059e+37
    %v114 = vand.u32 %v101, 2147483648
    %v115 = vor.u32 1.1754944e-38, %v114
    %v116 = vsel %vm113, %v115, %v111
    %v117 = vmul.f32 1.0, %v116
    %v118 = vrcp.pop %v102
    %v119 = vmul.f32 %v102, %v118
    %v120 = vsub.f32 1.0, %v119
    %v121 = vmul.f32 %v118, %v120
    %v122 = vadd.f32 %v118, %v121
    %vm123 = vweird.f32 %v102
    %vm124 = vweird.f32 %v118
    %vm125 = vmor %vm123, %vm124
    %v126 = vsel %vm125, %v118, %v122
    %v127 = vand.u32 2147483647, %v102
    %vm128 = vcmp.eq.f32.partialorder %v127, 8.507059e+37
    %v129 = vand.u32 %v102, 2147483648
    %v130 = vor.u32 1.1754944e-38, %v129
    %v131 = vsel %vm128, %v130, %v126
    %v132 = vmul.f32 1.0, %v131
    %v133 = vsub.f32 %v65, 12.0
    %v134 = vsub.f32 %v66, 12.0
    %v135 = vrcp.pop 34.8
    %v136 = vmul.f32 34.8, %v135
    %v137 = vsub.f32 1.0, %v136
    %v138 = vmul.f32 %v135, %v137
    %v139 = vadd.f32 %v135, %v138
    %vm140 = vweird.f32 %v135
    %v141 = vsel %vm140, %v135, %v139
    %v142 = vmul.f32 %v133, %v141
    %v143 = vmul.f32 %v134, %v141
    %v144 = vmul.f32 %v142, 1.442695
    %v145 = vpow.pop %v144
    %v146 = vmul.f32 %v143, 1.442695
    %v147 = vpow.pop %v146
    %v148 = vsub.f32 0.0, %v142
    %v149 = vsub.f32 0.0, %v143
    %v150 = vmul.f32 %v148, 1.442695
    %v151 = vpow.pop %v150
    %v152 = vmul.f32 %v149, 1.442695
    %v153 = vpow.pop %v152
    %v154 = vadd.f32 %v145, %v151
    %v155 = vadd.f32 %v147, %v153
    %v156 = vmul.f32 %v154, 0.5
    %v157 = vmul.f32 %v155, 0.5
    %v158 = vmul.f32 %v117, -4.0
    %v159 = vmul.f32 %v132, -4.0
    %v160 = vsub.f32 %v65, 120.0
    %v161 = vsub.f32 %v66, 120.0
    %v162 = vmul.f32 %v158, %v160
    %v163 = vmul.f32 %v159, %v161
    %v164 = vmul.f32 %v67, 8.0
    %v165 = vmul.f32 %v68, 8.0
    %v166 = vsub.f32 %v65, -84.0
    %v167 = vsub.f32 %v66, -84.0
    %v168 = vmul.f32 %v164, %v166
    %v169 = vmul.f32 %v165, %v167
    %v170 = vsub.f32 %v162, %v168
    %v171 = vsub.f32 %v163, %v169
    %v172 = vsub.f32 %v65, -60.0
    %v173 = vsub.f32 %v66, -60.0
    %v174 = vmul.f32 %v172, 2.0
    %v175 = vmul.f32 %v173, 2.0
    %v176 = vsub.f32 %v170, %v174
    %v177 = vsub.f32 %v171, %v175
    %v178 = vadd.f32 %v176, 40.0
    %v179 = vadd.f32 %v177, 40.0
    %v180 = vsub.f32 %v117, %v67
    %v181 = vsub.f32 %v132, %v68
    %v182 = vmul.f32 %v180, %v156
    %v183 = vmul.f32 %v181, %v157
    %v184 = vstv %s25
    %v185 = vmul.f32 %v182, %v184
    %v186 = vmul.f32 %v183, %v184
    %v187 = vsel %vm33, %v178, %v185
    %v188 = vsel %vm34, %v179, %v186
    %189 = vst [vmem:[#allocation7] sm:$0xff] %v187
    %190 = vst [vmem:[#allocation7 + $0x8] sm:$0xff] %v188
    // Predicated region
    $region10: #{tpu_custom_call.1} parent=1 // pred_check
      _
    $region11: #{tpu_custom_call.1} parent=1 // pred_check_branch
      %192 = sbr.rel (0) target = $region13
    $region12: #{tpu_custom_call.1} parent=1 // pred_region
      %194 = vsyncadd [#allocation6], 0
      %s196 = sshll.u32 [#allocation7], 4
      %s197 = int_to_ptr.vmem [resolvable:$true] %s196
      %s198 = sshll.u32 %s2, 4
      %s199 = int_to_ptr.hbm [resolvable:$true] %s198
      %201 = dma.vmem_to_hbm [thread:$0]  %s197, 256, %s199, [#allocation6]
    $region13: #{tpu_custom_call.1} parent=1 // pred_fallthru
      _
    // Predicated region
    $region14: #{tpu_custom_call.1} parent=1 // pred_check
      _
    $region15: #{tpu_custom_call.1} parent=1 // pred_check_branch
      %203 = sbr.rel (0) target = $region17
    $region16: #{tpu_custom_call.1} parent=1 // pred_region
      %205 = dma.done [#allocation6], 256
    $region17: #{tpu_custom_call.1} parent=1 // pred_fallthru
      _
    %206 = vsyncpa [#allocation5], 1
    %207 = vsyncpa [#allocation6], 1

</llo_original>
